<compile_context>
chip_gen: v7x
topology: tpu7x:2x2x1
jax: 0.10.0
libtpu: 0.0.40
codegen_flags: <defaults>
</compile_context>

<pallas_src>
import functools

import jax
import jax.numpy as jnp
from jax.experimental import pallas as pl
from jax.experimental.pallas import tpu as pltpu


def _conv3x3_kernel(x_ref, w_ref, b_ref, o_ref, *, H, W, use_bf16_matmul):
    """One batch element per grid step.

    x_ref: (1, Cin, H*W)   flattened NCHW input tile (VMEM)
    w_ref: (Cout, 9*Cin)   im2col-flattened conv weights (VMEM, whole array)
    b_ref: (Cout, 1)       bias (VMEM, whole array)
    o_ref: (1, Cout, H*W)  flattened NCHW output tile (VMEM, lane-dense)
    """
    cin = x_ref.shape[1]
    hw = x_ref.shape[2]

    x = x_ref[0]                                             # (Cin, H*W)

    # Flattened-pixel index -> row/column masks for replicate ("edge") padding.
    lane = jax.lax.broadcasted_iota(jnp.int32, (cin, hw), 1)
    col = lane % W
    first_col = col == 0
    last_col = col == W - 1
    first_row = lane < W
    last_row = lane >= hw - W

    # Vertical neighbours (dy = 0 / 2), replicated at the top/bottom rows.
    # pltpu.roll(x, s)[i] == x[(i - s) mod hw]; lane rotation runs on the XLU
    # slot which is otherwise idle here.
    x_up = jnp.where(first_row, x, pltpu.roll(x, shift=W, axis=1))
    x_down = jnp.where(last_row, x, pltpu.roll(x, shift=hw - W, axis=1))

    # For each vertical variant build left/right neighbours (dx = 0 / 2),
    # replicated at the first/last column of every image row.
    taps = []
    for v in (x_up, x, x_down):                              # dy = 0, 1, 2
        v_left = jnp.where(first_col, v, pltpu.roll(v, shift=1, axis=1))
        v_right = jnp.where(last_col, v, pltpu.roll(v, shift=hw - 1, axis=1))
        taps.extend((v_left, v, v_right))                    # dx = 0, 1, 2

    # im2col matrix: K = 9*Cin stacked on sublanes, H*W on lanes.
    patches = jnp.concatenate(taps, axis=0)                  # (9*Cin, H*W)

    w = w_ref[...]                                           # (Cout, 9*Cin)
    if use_bf16_matmul:
        # Native-bf16 MXU path for v6e/v7x (f32 accumulation is kept).
        patches = patches.astype(jnp.bfloat16)
        w = w.astype(jnp.bfloat16)

    # Single K = 9*Cin contraction; bias folded into the epilogue.
    out = jnp.dot(w, patches, preferred_element_type=jnp.float32)
    out = out + b_ref[...].astype(jnp.float32)               # (Cout, 1) broadcast
    o_ref[0] = out.astype(o_ref.dtype)                       # unmasked, lane-dense


def head_forward(x_nchw, weight, bias, *, use_bf16_matmul=False):
    """Forward pass of Head (Conv2d 3x3, padding=1, padding_mode='replicate').

    x_nchw: (B, Cin, H, W) float32
    weight: (Cout, Cin, 3, 3) float32 (PyTorch conv weight layout)
    bias:   (Cout,) float32
    returns (B, Cout, H, W) float32
    """
    B, Cin, H, W = x_nchw.shape
    Cout = weight.shape[0]
    HW = H * W

    # Contiguous reshapes only (bitcasts) — no activation transposes / pads.
    x_flat = x_nchw.reshape(B, Cin, HW)
    # K ordering must match the kernel's tap stacking: ((dy*3 + dx)*Cin + ci).
    w_flat = jnp.transpose(weight, (0, 2, 3, 1)).reshape(Cout, 9 * Cin)
    b_col = bias.reshape(Cout, 1)

    kernel = functools.partial(
        _conv3x3_kernel, H=H, W=W, use_bf16_matmul=use_bf16_matmul)

    # TODO(synk): if H*W*Cin grows beyond a few MiB, tile H per grid step with
    # a 2-row halo instead of a full frame per batch (v7x has only 64 MiB VMEM).
    out_flat = pl.pallas_call(
        kernel,
        out_shape=jax.ShapeDtypeStruct((B, Cout, HW), x_nchw.dtype),
        grid_spec=pltpu.PrefetchScalarGridSpec(
            num_scalar_prefetch=0,
            grid=(B,),
            in_specs=[
                pl.BlockSpec((1, Cin, HW), lambda b: (b, 0, 0)),
                pl.BlockSpec((Cout, 9 * Cin), lambda b: (0, 0)),
                pl.BlockSpec((Cout, 1), lambda b: (0, 0)),
            ],
            out_specs=pl.BlockSpec((1, Cout, HW), lambda b: (b, 0, 0)),
        ),
        compiler_params=pltpu.CompilerParams(
            dimension_semantics=("parallel",),     # both v7x TCs get a batch
            vmem_limit_bytes=32 * 1024 * 1024),
    )(x_flat, w_flat, b_col)

    return out_flat.reshape(B, Cout, H, W)


def init_head_params(key, in_channels, out_channels):
    """Deterministic params matching Head.__init__:
       - conv.weight: kaiming_normal_ (fan_in = Cin*3*3, gain = sqrt(2))
       - conv.bias:   constant -2
    """
    fan_in = in_channels * 3 * 3
    std = (2.0 / fan_in) ** 0.5
    weight = std * jax.random.normal(
        key, (out_channels, in_channels, 3, 3), dtype=jnp.float32)
    bias = jnp.full((out_channels,), -2.0, dtype=jnp.float32)
    return weight, bias


def _head_reference(x_nchw, weight, bias):
    """Pure-JAX reference (replicate padding + VALID conv + bias)."""
    x_pad = jnp.pad(x_nchw, ((0, 0), (0, 0), (1, 1), (1, 1)), mode="edge")
    out = jax.lax.conv_general_dilated(
        x_pad, weight, window_strides=(1, 1), padding="VALID",
        dimension_numbers=("NCHW", "OIHW", "NCHW"),
        precision=jax.lax.Precision.HIGHEST)
    return out + bias.reshape(1, -1, 1, 1)


if __name__ == "__main__":
    key = jax.random.PRNGKey(0)
    k_x, k_w = jax.random.split(key)

    B, Cin, Cout, H, W = 2, 4, 8, 16, 16
    x = jax.random.normal(k_x, (B, Cin, H, W), dtype=jnp.float32)
    weight, bias = init_head_params(k_w, Cin, Cout)

    out = head_forward(x, weight, bias)
    out = jax.block_until_ready(out)

    assert out.shape == (B, Cout, H, W), out.shape

    ref = jax.block_until_ready(_head_reference(x, weight, bias))
    max_err = float(jnp.max(jnp.abs(out - ref)))
    assert max_err < 1e-3, f"max abs error {max_err}"

    print("KERNEL_OK")
</pallas_src>

<mosaic_0001>
module attributes {stable_mosaic.version = 11 : i64} {
  func.func @_conv3x3_kernel(%arg0: i32, %arg1: memref<1x4x256xf32, #tpu.memory_space<vmem>>, %arg2: memref<8x36xf32, #tpu.memory_space<vmem>>, %arg3: memref<8x1xf32, #tpu.memory_space<vmem>>, %arg4: memref<1x8x256xf32, #tpu.memory_space<vmem>>) attributes {dimension_semantics = [#tpu.dimension_semantics<parallel>], iteration_bounds = array<i64: 2>, scalar_prefetch = 0 : i64, scratch_operands = 0 : i64, tpu.core_type = #tpu.core_type<tc>, window_params = [{transform_indices = @transform_0, window_bounds = array<i64: 1, 4, 256>}, {pipeline_mode = #tpu.pipeline_mode<synchronous>, transform_indices = @transform_1, window_bounds = array<i64: 8, 36>}, {pipeline_mode = #tpu.pipeline_mode<synchronous>, transform_indices = @transform_2, window_bounds = array<i64: 8, 1>}, {transform_indices = @transform_3, window_bounds = array<i64: 1, 8, 256>}]} {
    %c0 = arith.constant 0 : index
    %c0_0 = arith.constant 0 : index
    %c0_1 = arith.constant 0 : index
    %0 = vector.load %arg1[%c0, %c0_0, %c0_1] : memref<1x4x256xf32, #tpu.memory_space<vmem>>, vector<1x4x256xf32>
    %1 = vector.shape_cast %0 : vector<1x4x256xf32> to vector<4x256xf32>
    %2 = tpu.iota {dimensions = array<i32: 1>} : vector<4x256xi32>
    %c16_i32 = arith.constant 16 : i32
    %c0_i32 = arith.constant 0 : i32
    %3 = arith.cmpi eq, %c16_i32, %c0_i32 : i32
    %c1_i32 = arith.constant 1 : i32
    %4 = arith.select %3, %c1_i32, %c16_i32 : i32
    %5 = vector.broadcast %4 : i32 to vector<4x256xi32>
    %6 = arith.remsi %2, %5 : vector<4x256xi32>
    %c0_i32_2 = arith.constant 0 : i32
    %7 = vector.broadcast %c0_i32_2 : i32 to vector<4x256xi32>
    %8 = arith.cmpi ne, %6, %7 : vector<4x256xi32>
    %c0_i32_3 = arith.constant 0 : i32
    %9 = vector.broadcast %c0_i32_3 : i32 to vector<4x256xi32>
    %10 = arith.cmpi slt, %6, %9 : vector<4x256xi32>
    %c0_i32_4 = arith.constant 0 : i32
    %11 = arith.cmpi slt, %4, %c0_i32_4 : i32
    %12 = vector.broadcast %11 : i1 to vector<4x256xi1>
    %13 = vector.broadcast %12 : vector<4x256xi1> to vector<4x256xi1>
    %14 = arith.xori %10, %13 : vector<4x256xi1>
    %15 = arith.andi %14, %8 : vector<4x256xi1>
    %16 = vector.broadcast %4 : i32 to vector<4x256xi32>
    %17 = arith.addi %6, %16 : vector<4x256xi32>
    %18 = arith.select %15, %17, %6 : vector<4x256xi1>, vector<4x256xi32>
    %c0_i32_5 = arith.constant 0 : i32
    %19 = vector.broadcast %c0_i32_5 : i32 to vector<4x256xi32>
    %20 = arith.cmpi eq, %18, %19 : vector<4x256xi32>
    %c15_i32 = arith.constant 15 : i32
    %21 = vector.broadcast %c15_i32 : i32 to vector<4x256xi32>
    %22 = arith.cmpi eq, %18, %21 : vector<4x256xi32>
    %c16_i32_6 = arith.constant 16 : i32
    %23 = vector.broadcast %c16_i32_6 : i32 to vector<4x256xi32>
    %24 = arith.cmpi slt, %2, %23 : vector<4x256xi32>
    %c240_i32 = arith.constant 240 : i32
    %25 = vector.broadcast %c240_i32 : i32 to vector<4x256xi32>
    %26 = arith.cmpi sge, %2, %25 : vector<4x256xi32>
    %c16_i32_7 = arith.constant 16 : i32
    %27 = tpu.dynamic_rotate %1 by %c16_i32_7 dim 1 : vector<4x256xf32>, i32 -> vector<4x256xf32>
    %28 = arith.select %24, %1, %27 : vector<4x256xi1>, vector<4x256xf32>
    %c240_i32_8 = arith.constant 240 : i32
    %29 = tpu.dynamic_rotate %1 by %c240_i32_8 dim 1 : vector<4x256xf32>, i32 -> vector<4x256xf32>
    %30 = arith.select %26, %1, %29 : vector<4x256xi1>, vector<4x256xf32>
    %c1_i32_9 = arith.constant 1 : i32
    %31 = tpu.dynamic_rotate %28 by %c1_i32_9 dim 1 : vector<4x256xf32>, i32 -> vector<4x256xf32>
    %32 = arith.select %20, %28, %31 : vector<4x256xi1>, vector<4x256xf32>
    %c255_i32 = arith.constant 255 : i32
    %33 = tpu.dynamic_rotate %28 by %c255_i32 dim 1 : vector<4x256xf32>, i32 -> vector<4x256xf32>
    %34 = arith.select %22, %28, %33 : vector<4x256xi1>, vector<4x256xf32>
    %c1_i32_10 = arith.constant 1 : i32
    %35 = tpu.dynamic_rotate %1 by %c1_i32_10 dim 1 : vector<4x256xf32>, i32 -> vector<4x256xf32>
    %36 = arith.select %20, %1, %35 : vector<4x256xi1>, vector<4x256xf32>
    %c255_i32_11 = arith.constant 255 : i32
    %37 = tpu.dynamic_rotate %1 by %c255_i32_11 dim 1 : vector<4x256xf32>, i32 -> vector<4x256xf32>
    %38 = arith.select %22, %1, %37 : vector<4x256xi1>, vector<4x256xf32>
    %c1_i32_12 = arith.constant 1 : i32
    %39 = tpu.dynamic_rotate %30 by %c1_i32_12 dim 1 : vector<4x256xf32>, i32 -> vector<4x256xf32>
    %40 = arith.select %20, %30, %39 : vector<4x256xi1>, vector<4x256xf32>
    %c255_i32_13 = arith.constant 255 : i32
    %41 = tpu.dynamic_rotate %30 by %c255_i32_13 dim 1 : vector<4x256xf32>, i32 -> vector<4x256xf32>
    %42 = arith.select %22, %30, %41 : vector<4x256xi1>, vector<4x256xf32>
    %43 = tpu.concatenate %32, %28, %34, %36, %1, %38, %40, %30, %42 in 0 : vector<4x256xf32>, vector<4x256xf32>, vector<4x256xf32>, vector<4x256xf32>, vector<4x256xf32>, vector<4x256xf32>, vector<4x256xf32>, vector<4x256xf32>, vector<4x256xf32> -> vector<36x256xf32>
    %c0_14 = arith.constant 0 : index
    %c0_15 = arith.constant 0 : index
    %44 = vector.load %arg2[%c0_14, %c0_15] : memref<8x36xf32, #tpu.memory_space<vmem>>, vector<8x36xf32>
    %cst = arith.constant dense<0.000000e+00> : vector<8x256xf32>
    %45 = tpu.matmul %44, %43, %cst {dimension_numbers = #tpu.dot_dimension_numbers<[1], [0], [0], [1], [0, 0, 1, 1], [], []>} : vector<8x36xf32>, vector<36x256xf32>, vector<8x256xf32> -> vector<8x256xf32>
    %c0_16 = arith.constant 0 : index
    %c0_17 = arith.constant 0 : index
    %46 = vector.load %arg3[%c0_16, %c0_17] : memref<8x1xf32, #tpu.memory_space<vmem>>, vector<8x1xf32>
    %47 = vector.broadcast %46 : vector<8x1xf32> to vector<8x256xf32>
    %48 = arith.addf %45, %47 : vector<8x256xf32>
    %c0_18 = arith.constant 0 : index
    %c0_19 = arith.constant 0 : index
    %c0_20 = arith.constant 0 : index
    %49 = vector.load %arg4[%c0_18, %c0_19, %c0_20] : memref<1x8x256xf32, #tpu.memory_space<vmem>>, vector<1x8x256xf32>
    %50 = vector.shape_cast %49 : vector<1x8x256xf32> to vector<8x256xf32>
    %51 = vector.shape_cast %48 : vector<8x256xf32> to vector<1x8x256xf32>
    tpu.vector_store %arg4[%c0_18, %c0_19, %c0_20], %51 {strides = array<i32>} : memref<1x8x256xf32, #tpu.memory_space<vmem>>, vector<1x8x256xf32>,
    return
  }
  func.func @transform_0(%arg0: i32) -> (i32, i32, i32) {
    %c0_i32 = arith.constant 0 : i32
    %c0_i32_0 = arith.constant 0 : i32
    %c0_i32_1 = arith.constant 0 : i32
    return %arg0, %c0_i32, %c0_i32_0 : i32, i32, i32
  }
  func.func @transform_1(%arg0: i32) -> (i32, i32) {
    %c0_i32 = arith.constant 0 : i32
    %c0_i32_0 = arith.constant 0 : i32
    %c0_i32_1 = arith.constant 0 : i32
    return %c0_i32, %c0_i32_0 : i32, i32
  }
  func.func @transform_2(%arg0: i32) -> (i32, i32) {
    %c0_i32 = arith.constant 0 : i32
    %c0_i32_0 = arith.constant 0 : i32
    %c0_i32_1 = arith.constant 0 : i32
    return %c0_i32, %c0_i32_0 : i32, i32
  }
  func.func @transform_3(%arg0: i32) -> (i32, i32, i32) {
    %c0_i32 = arith.constant 0 : i32
    %c0_i32_0 = arith.constant 0 : i32
    %c0_i32_1 = arith.constant 0 : i32
    return %arg0, %c0_i32, %c0_i32_0 : i32, i32, i32
  }
}

</mosaic_0001>

<llo_original>
// kernel: tpu_custom_call.1
$region0: #{tpu_custom_call.1}
  #allocation0 [shape = 'u32[]', space=smem, size = 0x4, offset = 0x4, fixed_abs, tag = 'smem constant byte address 0x4 - core index']
  #allocation1 [shape = 'u32[144,128]{1,0:T(1,128)}', space=vmem, size = 0x12000, scoped, tag = 'internal scratch']
  %s0 = inlined_call_operand.hbm [shape: f32[2,4,256], index: 0, kind: input, shape index: {}]
  %s1 = inlined_call_operand.vmem [shape: f32[8,36], index: 1, kind: input, shape index: {}]
  %s2 = inlined_call_operand.vmem [shape: f32[8,1], index: 2, kind: input, shape index: {}]
  %s3 = inlined_call_operand.hbm [shape: f32[2,8,256], index: 3, kind: output, shape index: {}]
  %s4 = sld [smem:[#allocation0]]
  $region49: #{tpu_custom_call.1} parent=0
    _
  %s6 = ssub.s32 1, %s4
  %s7 = scalar_select 0, %s6, %s4
  $region1: #{tpu_custom_call.1} parent=0
    #allocation2 [shape = 'u8[8192]{0}', space=vmem, size = 0x2000, scoped, tag = 'input window, operand 0']
    #allocation3 [shape = 's32[2]{0}', space=sflag, size = 0x8, scoped, tag = 'scoped memory for tpu_custom_call.1']
    #allocation4 [shape = 's32[2]{0}', space=sflag, size = 0x8, scoped, tag = 'scoped memory for tpu_custom_call.1']
    #allocation5 [shape = 'u8[16384]{0}', space=vmem, size = 0x4000, scoped, tag = 'output window, operand 0']
    %8 = vsyncpa [#allocation3], 0
    %s9 = scalar_lea.sflag [#allocation3], 1
    %10 = vsyncpa %s9, 0
    %11 = vsyncpa [#allocation4], 0
    %s12 = scalar_lea.sflag [#allocation4], 1
    %13 = vsyncpa %s12, 0
    loop: start=0, step=1, limit=4
    $region2: #{tpu_custom_call.1} parent=1 // loop_pre_header
      _
    $region3: #{tpu_custom_call.1} parent=1 // loop_header
      %s15 = sphi 0, %s19
      %p16 = scmp.ge.s32.totalorder %s15, 4
      %s25 = sphi 0, %s27
      %s28 = sphi 0, %s25
      %s29 = sphi 0, %s28
      %s45 = sphi 0, %s29
      %s49 = sphi 0, %s49
      %s51 = sphi 0, %s49
      %s52 = sphi 0, %s51
      %s66 = sphi 0, %s52
      %s70 = sphi 0, %s70
      %s72 = sphi 0, %s70
      %s73 = sphi 0, %s72
      %s87 = sphi 0, %s73
      %s93 = sphi 0, %s95
      %s96 = sphi 0, %s93
      %s97 = sphi 0, %s96
      %s113 = sphi 0, %s97
    $region4: #{tpu_custom_call.1} parent=1 // loop_header_branch
      %18 = sbr.rel (%p16) target = $region8
    $region5: #{tpu_custom_call.1} parent=1 // loop_body
      %s20 = ssub.s32 %s15, 1
      %s21 = ssub.s32 %s15, 2
      %s22 = sadd.s32 %s15, 1
      %s23 = ssub.s32 %s15, %s22
      %p24 = scmp.eq.s32.totalorder %s23, 0
      %s26 = sadd.s32 %s25, 1
      %s27 = scalar_select %p24, %s25, %s26
      %p30 = pneg %p24
      %p31 = scmp.eq.s32.totalorder %s15, 1
      %p32 = por %p30, %p31
      %p33 = scmp.ne.s32.totalorder %s25, %s28
      %p34 = scmp.eq.s32.totalorder %s15, 0
      %p35 = por %p33, %p34
      %p36 = scmp.ne.s32.totalorder %s25, %s28
      %p37 = scmp.eq.s32.totalorder %s20, 1
      %p38 = por %p36, %p37
      %p39 = scmp.ne.s32.totalorder %s28, %s29
      %p40 = scmp.eq.s32.totalorder %s20, 0
      %p41 = por %p39, %p40
      %p42 = scmp.ne.s32.totalorder %s28, %s29
      %p43 = scmp.eq.s32.totalorder %s21, 1
      %p44 = por %p42, %p43
      %p46 = scmp.ne.s32.totalorder %s29, %s45
      %p47 = scmp.eq.s32.totalorder %s21, 0
      %p48 = por %p46, %p47
      %s50 = sadd.s32 %s49, 1
      %p53 = scmp.eq.s32.totalorder %s15, 1
      %p54 = scmp.ne.s32.totalorder %s49, %s51
      %p55 = scmp.eq.s32.totalorder %s15, 0
      %p56 = por %p54, %p55
      %p57 = scmp.ne.s32.totalorder %s49, %s51
      %p58 = scmp.eq.s32.totalorder %s20, 1
      %p59 = por %p57, %p58
      %p60 = scmp.ne.s32.totalorder %s51, %s52
      %p61 = scmp.eq.s32.totalorder %s20, 0
      %p62 = por %p60, %p61
      %p63 = scmp.ne.s32.totalorder %s51, %s52
      %p64 = scmp.eq.s32.totalorder %s21, 1
      %p65 = por %p63, %p64
      %p67 = scmp.ne.s32.totalorder %s52, %s66
      %p68 = scmp.eq.s32.totalorder %s21, 0
      %p69 = por %p67, %p68
      %s71 = sadd.s32 %s70, 1
      %p74 = scmp.eq.s32.totalorder %s15, 1
      %p75 = scmp.ne.s32.totalorder %s70, %s72
      %p76 = scmp.eq.s32.totalorder %s15, 0
      %p77 = por %p75, %p76
      %p78 = scmp.ne.s32.totalorder %s70, %s72
      %p79 = scmp.eq.s32.totalorder %s20, 1
      %p80 = por %p78, %p79
      %p81 = scmp.ne.s32.totalorder %s72, %s73
      %p82 = scmp.eq.s32.totalorder %s20, 0
      %p83 = por %p81, %p82
      %p84 = scmp.ne.s32.totalorder %s72, %s73
      %p85 = scmp.eq.s32.totalorder %s21, 1
      %p86 = por %p84, %p85
      %p88 = scmp.ne.s32.totalorder %s73, %s87
      %p89 = scmp.eq.s32.totalorder %s21, 0
      %p90 = por %p88, %p89
      %s91 = ssub.s32 %s15, %s22
      %p92 = scmp.eq.s32.totalorder %s91, 0
      %s94 = sadd.s32 %s93, 1
      %s95 = scalar_select %p92, %s93, %s94
      %p98 = pneg %p92
      %p99 = scmp.eq.s32.totalorder %s15, 1
      %p100 = por %p98, %p99
      %p101 = scmp.ne.s32.totalorder %s93, %s96
      %p102 = scmp.eq.s32.totalorder %s15, 0
      %p103 = por %p101, %p102
      %p104 = scmp.ne.s32.totalorder %s93, %s96
      %p105 = scmp.eq.s32.totalorder %s20, 1
      %p106 = por %p104, %p105
      %p107 = scmp.ne.s32.totalorder %s96, %s97
      %p108 = scmp.eq.s32.totalorder %s20, 0
      %p109 = por %p107, %p108
      %p110 = scmp.ne.s32.totalorder %s96, %s97
      %p111 = scmp.eq.s32.totalorder %s21, 1
      %p112 = por %p110, %p111
      %p114 = scmp.ne.s32.totalorder %s97, %s113
      %p115 = scmp.eq.s32.totalorder %s21, 0
      %p116 = por %p114, %p115
      %p117 = scmp.le.s32.totalorder 1, %s15
      %p118 = scmp.lt.s32.totalorder %s15, 3
      %p119 = pnand %p117, %p118
      %p120 = pneg %p119
      // Predicated region
      $region9: #{tpu_custom_call.1} parent=5 // pred_check
        _
      $region10: #{tpu_custom_call.1} parent=5 // pred_check_branch
        %122 = sbr.rel (%p119) target = $region12
      $region11: #{tpu_custom_call.1} parent=5 // pred_region
        %s123 = ssub.s32 %s15, 1
        // Predicated region
        $region13: #{tpu_custom_call.1} parent=11 // pred_check
          %p124 = pneg %p62
        $region14: #{tpu_custom_call.1} parent=11 // pred_check_branch
          %126 = sbr.rel (%p124) target = $region16
        $region15: #{tpu_custom_call.1} parent=11 // pred_region
          _
        $region16: #{tpu_custom_call.1} parent=11 // pred_fallthru
          _
        // Predicated region
        $region17: #{tpu_custom_call.1} parent=11 // pred_check
          %p127 = pneg %p83
        $region18: #{tpu_custom_call.1} parent=11 // pred_check_branch
          %129 = sbr.rel (%p127) target = $region20
        $region19: #{tpu_custom_call.1} parent=11 // pred_region
          _
        $region20: #{tpu_custom_call.1} parent=11 // pred_fallthru
          _
      $region12: #{tpu_custom_call.1} parent=5 // pred_fallthru
        _
      %p130 = scmp.lt.s32.totalorder %s15, 2
      // Predicated region
      $region21: #{tpu_custom_call.1} parent=5 // pred_check
        %p131 = pneg %p130
      $region22: #{tpu_custom_call.1} parent=5 // pred_check_branch
        %133 = sbr.rel (%p131) target = $region24
      $region23: #{tpu_custom_call.1} parent=5 // pred_region
        // Predicated region
        $region25: #{tpu_custom_call.1} parent=23 // pred_check
          %p134 = pneg %p35
        $region26: #{tpu_custom_call.1} parent=23 // pred_check_branch
          %136 = sbr.rel (%p134) target = $region28
        $region27: #{tpu_custom_call.1} parent=23 // pred_region
          %s137 = sand.u32 %s25, 1
          %s138 = scalar_lea.sflag [#allocation3], %s137
          %s139 = sand.u32 %s25, 1
          %s140 = smul.addr %s139, 8
          %s141 = scalar_lea.vmem [#allocation2], %s140
          %s143 = ssub.s32 128, 128
          %144 = vsyncadd %s138, %s143
          %s145 = smul.addr %s15, 2
          %s146 = smul.addr %s145, 64
          %s147 = scalar_lea.hbm %s0, %s146
          %s149 = sshll.u32 %s141, 4
          %s150 = int_to_ptr.vmem [resolvable:$true] %s149
          %152 = dma.hbm_to_vmem [thread:$0]  %s147, 128, %s150, %s138
        $region28: #{tpu_custom_call.1} parent=23 // pred_fallthru
          _
      $region24: #{tpu_custom_call.1} parent=5 // pred_fallthru
        _
      %p153 = scmp.le.s32.totalorder 1, %s15
      %p154 = scmp.lt.s32.totalorder %s15, 3
      %p155 = pnand %p153, %p154
      %p156 = pneg %p155
      // Predicated region
      $region29: #{tpu_custom_call.1} parent=5 // pred_check
        _
      $region30: #{tpu_custom_call.1} parent=5 // pred_check_branch
        %158 = sbr.rel (%p155) target = $region32
      $region31: #{tpu_custom_call.1} parent=5 // pred_region
        %s159 = ssub.s32 %s15, 1
        %s160 = sand.u32 %s28, 1
        %s161 = scalar_lea.sflag [#allocation3], %s160
        %s162 = sand.u32 %s28, 1
        %s163 = smul.addr %s162, 8
        %s164 = scalar_lea.vmem [#allocation2], %s163
        // Predicated region
        $region33: #{tpu_custom_call.1} parent=31 // pred_check
          %p165 = pneg %p41
        $region34: #{tpu_custom_call.1} parent=31 // pred_check_branch
          %167 = sbr.rel (%p165) target = $region36
        $region35: #{tpu_custom_call.1} parent=31 // pred_region
          %168 = dma.done %s161, 128
        $region36: #{tpu_custom_call.1} parent=31 // pred_fallthru
          _
        %s169 = sand.u32 %s28, 1
        %s170 = scalar_lea.sflag [#allocation3], %s169
        %s171 = sand.u32 %s28, 1
        %s172 = smul.addr %s171, 8
        %s173 = scalar_lea.vmem [#allocation2], %s172
        %p174 = pneg %p41
        %p175 = pneg %p38
        %p176 = pneg %p62
        %p177 = pneg %p59
        %p178 = pneg %p83
        %p179 = pneg %p80
        %p180 = pneg %p109
        %p181 = pneg %p106
        %s182 = sand.u32 %s96, 1
        %s183 = scalar_lea.sflag [#allocation4], %s182
        %s184 = sand.u32 %s96, 1
        %s185 = smul.addr %s184, 16
        %s186 = scalar_lea.vmem [#allocation5], %s185
        %v187 = vld [vmem:[%s164] sm:$0xff]
        %v188 = vlaneseq
        %v189 = vand.u32 %v188, 127
        %v190 = vadd.s32 %v189, 128
        %vm191 = vcmp.lt.s32.totalorder %v189, 0
        %v192 = vsub.s32 0, %v189
        %v193 = vsel %vm191, %v192, %v189
        %v194 = vshrl.u32 %v193, 4
        %v195 = vand.u32 %v193, 15
        %v196 = vsub.s32 0, %v195
        %v197 = vsel %vm191, %v196, %v195
        %vm198 = vcmp.lt.s32.totalorder %v190, 0
        %v199 = vsub.s32 0, %v190
        %v200 = vsel %vm198, %v199, %v190
        %v201 = vshrl.u32 %v200, 4
        %v202 = vand.u32 %v200, 15
        %v203 = vsub.s32 0, %v202
        %v204 = vsel %vm198, %v203, %v202
        %vm205 = vcmp.ne.s32.totalorder %v197, 0
        %vm206 = vcmp.ne.s32.totalorder %v204, 0
        %vm207 = vcmp.lt.s32.totalorder %v197, 0
        %vm208 = vcmp.lt.s32.totalorder %v204, 0
        %vm209 = vmand %vm207, %vm205
        %vm210 = vmand %vm208, %vm206
        %v211 = vadd.s32 %v197, 16
        %v212 = vadd.s32 %v204, 16
        %v213 = vsel %vm209, %v211, %v197
        %v214 = vsel %vm210, %v212, %v204
        %vm215 = vcmp.eq.s32.totalorder %v213, 0
        %vm216 = vcmp.eq.s32.totalorder %v214, 0
        %vm217 = vcmp.eq.s32.totalorder %v213, 15
        %vm218 = vcmp.eq.s32.totalorder %v214, 15
        %vm219 = vcmp.lt.s32.totalorder %v189, 16
        %vm220 = vcmp.lt.s32.totalorder %v190, 16
        %vm221 = vcmp.ge.s32.totalorder %v189, 240
        %vm222 = vcmp.ge.s32.totalorder %v190, 240
        %v224 = vcombine.high %v187, %v187
        %226 = vrot.lane.b32.xlu0 %v187, 16
        %v227 = vpop.permute.xlu0 %226
        %228 = vrot.lane.b32.xlu0 %v224, 16
        %v229 = vpop.permute.xlu0 %228
        %v230 = vsel %vm219, %v227, %v229
        %v231 = vsel %vm219, %v229, %v227
        %v232 = vsel %vm219, %v187, %v231
        %v233 = vsel %vm220, %v224, %v230
        %234 = vrot.lane.b32.xlu0 %v187, 112
        %v235 = vpop.permute.xlu0 %234
        %236 = vrot.lane.b32.xlu0 %v224, 112
        %v237 = vpop.permute.xlu0 %236
        %vm238 = vcmp.lt.s32.totalorder %v189, 112
        %v239 = vsel %vm238, %v235, %v237
        %v240 = vsel %vm238, %v237, %v235
        %v241 = vsel %vm221, %v187, %v239
        %v242 = vsel %vm222, %v224, %v240
        %243 = vrot.lane.b32.xlu0 %v232, 1
        %v244 = vpop.permute.xlu0 %243
        %245 = vrot.lane.b32.xlu0 %v233, 1
        %v246 = vpop.permute.xlu0 %245
        %vm247 = vcmp.lt.s32.totalorder %v189, 1
        %v248 = vsel %vm247, %v244, %v246
        %v249 = vsel %vm247, %v246, %v244
        %v250 = vsel %vm215, %v232, %v249
        %v251 = vsel %vm216, %v233, %v248
        %252 = vrot.lane.b32.xlu0 %v232, 127
        %v253 = vpop.permute.xlu0 %252
        %254 = vrot.lane.b32.xlu0 %v233, 127
        %v255 = vpop.permute.xlu0 %254
        %vm256 = vcmp.lt.s32.totalorder %v189, 127
        %v257 = vsel %vm256, %v253, %v255
        %v258 = vsel %vm256, %v255, %v253
        %v259 = vsel %vm217, %v232, %v257
        %v260 = vsel %vm218, %v233, %v258
        %261 = vrot.lane.b32.xlu0 %v187, 1
        %v262 = vpop.permute.xlu0 %261
        %263 = vrot.lane.b32.xlu0 %v224, 1
        %v264 = vpop.permute.xlu0 %263
        %v265 = vsel %vm247, %v262, %v264
        %v266 = vsel %vm247, %v264, %v262
        %v267 = vsel %vm215, %v187, %v266
        %v268 = vsel %vm216, %v224, %v265
        %269 = vrot.lane.b32.xlu0 %v187, 127
        %v270 = vpop.permute.xlu0 %269
        %271 = vrot.lane.b32.xlu0 %v224, 127
        %v272 = vpop.permute.xlu0 %271
        %v273 = vsel %vm256, %v270, %v272
        %v274 = vsel %vm256, %v272, %v270
        %v275 = vsel %vm217, %v187, %v273
        %v276 = vsel %vm218, %v224, %v274
        %277 = vrot.lane.b32.xlu0 %v241, 1
        %v278 = vpop.permute.xlu0 %277
        %279 = vrot.lane.b32.xlu0 %v242, 1
        %v280 = vpop.permute.xlu0 %279
        %v281 = vsel %vm247, %v278, %v280
        %v282 = vsel %vm247, %v280, %v278
        %v283 = vsel %vm215, %v241, %v282
        %v284 = vsel %vm216, %v242, %v281
        %285 = vrot.lane.b32.xlu0 %v241, 127
        %v286 = vpop.permute.xlu0 %285
        %287 = vrot.lane.b32.xlu0 %v242, 127
        %v288 = vpop.permute.xlu0 %287
        %v289 = vsel %vm256, %v286, %v288
        %v290 = vsel %vm256, %v288, %v286
        %v291 = vsel %vm217, %v241, %v289
        %v292 = vsel %vm218, %v242, %v290
        %v295 = vrot.slane %v232, 4
        %v296 = vrot.slane %v233, 4
        %v301 = vrot.slane %v267, 4
        %v302 = vrot.slane %v268, 4
        %v307 = vrot.slane %v275, 4
        %v308 = vrot.slane %v276, 4
        %v313 = vrot.slane %v241, 4
        %v314 = vrot.slane %v242, 4
        %vm317 = vcmask 1043456
        %v318 = vsel %vm317, %v250, %v295
        %v319 = vsel %vm317, %v251, %v296
        %v320 = vsel %vm317, %v259, %v301
        %v321 = vsel %vm317, %v260, %v302
        %v322 = vsel %vm317, %v187, %v307
        %v323 = vsel %vm317, %v224, %v308
        %v324 = vsel %vm317, %v283, %v313
        %v325 = vsel %vm317, %v284, %v314
        %v326 = vld [vmem:[%s1] sm:$0xff]
        %v327 = vld [vmem:[%s2] sm:$0xff]
        %329 = vset.pattern.permute.xlu0 0
        %330 = vperm.xlu0 %329, %v327
        %v331 = vpop.permute.xlu0 %330
        %vm333 = vcmask 293888
        %v335 = vsel %vm333, %v326, 0
        %v338 = vsel %vm317, %v291, 0
        %v341 = vsel %vm317, %v292, 0
        %343 = vmatprep.subr.mxu0 %v319
        %344 = vmatpush1.msra.mxu0 %v318
        %345 = vmatprep.subr.mxu0 %v321
        %346 = vmatpush1.msra.mxu0 %v320
        %347 = vmatprep.subr.mxu0 %v323
        %348 = vmatpush1.msra.mxu0 %v322
        %349 = vmatprep.subr.mxu0 %v325
        %350 = vmatpush1.msra.mxu0 %v324
        %351 = vmatprep.subr.mxu0 %v341
        %352 = vmatpush1.msra.mxu0 %v338
        %353 = vmatprep.subr.mxu0 0.0
        %354 = vmatpush1.msra.mxu0 0.0
        %355 = vmatprep.subr.mxu0 0.0
        %356 = vmatpush1.msra.mxu0 0.0
        %357 = vmatprep.subr.mxu0 0.0
        %358 = vmatpush1.msra.mxu0 0.0
        %359 = vmatprep.subr.mxu0 0.0
        %360 = vmatpush1.msra.mxu0 0.0
        %361 = vmatprep.subr.mxu0 0.0
        %362 = vmatpush1.msra.mxu0 0.0
        %363 = vmatprep.subr.mxu0 0.0
        %364 = vmatpush1.msra.mxu0 0.0
        %365 = vmatprep.subr.mxu0 0.0
        %366 = vmatpush1.msra.mxu0 0.0
        %367 = vmatprep.subr.mxu0 0.0
        %368 = vmatpush1.msra.mxu0 0.0
        %369 = vmatprep.subr.mxu0 0.0
        %370 = vmatpush1.msra.mxu0 0.0
        %371 = vmatprep.subr.mxu0 0.0
        %372 = vmatpush1.msra.mxu0 0.0
        %373 = vmatprep.subr.mxu0 0.0
        %374 = vmatpush1.msra.mxu0 0.0
        %375 = vmatprep.subr.mxu0 0.0
        %376 = vmatpush1.msra.mxu0 0.0
        %377 = vmatprep.subr.mxu0 0.0
        %378 = vmatpush1.msra.mxu0 0.0
        %379 = vmatprep.subr.mxu0 0.0
        %380 = vmatpush1.msra.mxu0 0.0
        %381 = vmatprep.subr.mxu0 0.0
        %382 = vmatpush1.msra.mxu0 0.0
        %383 = vmatprep.subr.mxu0 0.0
        %384 = vmatpush1.msra.mxu0 0.0
        %385 = vmatprep.subr.mxu0 0.0
        %386 = vmatpush1.msra.mxu0 0.0
        %387 = vmatprep.subr.mxu0 0.0
        %388 = vmatpush1.msra.mxu0 0.0
        %389 = vmatprep.subr.mxu0 0.0
        %390 = vmatpush1.msra.mxu0 0.0
        %391 = vmatprep.subr.mxu0 0.0
        %392 = vmatpush1.msra.mxu0 0.0
        %393 = vmatprep.subr.mxu0 0.0
        %394 = vmatpush1.msra.mxu0 0.0
        %395 = vmatprep.subr.mxu0 0.0
        %396 = vmatpush1.msra.mxu0 0.0
        %397 = vmatprep.subr.mxu0 0.0
        %398 = vmatpush1.msra.mxu0 0.0
        %399 = vmatprep.subr.mxu0 0.0
        %400 = vmatpush1.msra.mxu0 0.0
        %401 = vmatprep.subr.mxu0 0.0
        %402 = vmatpush1.msra.mxu0 0.0
        %403 = vmatprep.subr.mxu0 0.0
        %404 = vmatpush1.msra.mxu0 0.0
        %405 = vmatprep.subr.mxu0 0.0
        %406 = vmatpush1.msra.mxu0 0.0
        %407 = vmatprep.mubr.f32.mxu0 0.0
        %408 = vmatmul.mubr.f32.gmra.mrb[0].mxu0 %v335
        %v409 = vpop.f32.mrb[0].mxu0
        %v410 = vadd.f32 %v331, %v409
        %v411 = vpop.f32.mrb[0].mxu0
        %v412 = vadd.f32 %v331, %v411
        %413 = vdwg.mxu0
        %414 = vst [vmem:[%s186] sm:$0xff] %v410
        %415 = vst [vmem:[%s186 + $0x8] sm:$0xff] %v412
        %s416 = sand.u32 %s96, 1
        %s417 = scalar_lea.sflag [#allocation4], %s416
        %s418 = sand.u32 %s96, 1
        %s419 = smul.addr %s418, 16
        %s420 = scalar_lea.vmem [#allocation5], %s419
        // Predicated region
        $region37: #{tpu_custom_call.1} parent=31 // pred_check
          %p421 = pneg %p106
        $region38: #{tpu_custom_call.1} parent=31 // pred_check_branch
          %423 = sbr.rel (%p421) target = $region40
        $region39: #{tpu_custom_call.1} parent=31 // pred_region
          %s425 = ssub.s32 256, 256
          %426 = vsyncadd %s417, %s425
          %s427 = smul.addr %s20, 2
          %s428 = smul.addr %s427, 128
          %s429 = scalar_lea.hbm %s3, %s428
          %s431 = sshll.u32 %s420, 4
          %s432 = int_to_ptr.vmem [resolvable:$true] %s431
          %434 = dma.vmem_to_hbm [thread:$0]  %s432, 256, %s429, %s417
        $region40: #{tpu_custom_call.1} parent=31 // pred_fallthru
          _
      $region32: #{tpu_custom_call.1} parent=5 // pred_fallthru
        _
      %p435 = scmp.le.s32.totalorder 2, %s15
      // Predicated region
      $region41: #{tpu_custom_call.1} parent=5 // pred_check
        %p436 = pneg %p435
      $region42: #{tpu_custom_call.1} parent=5 // pred_check_branch
        %438 = sbr.rel (%p436) target = $region44
      $region43: #{tpu_custom_call.1} parent=5 // pred_region
        %s439 = ssub.s32 %s15, 2
        // Predicated region
        $region45: #{tpu_custom_call.1} parent=43 // pred_check
          %p440 = pneg %p112
        $region46: #{tpu_custom_call.1} parent=43 // pred_check_branch
          %442 = sbr.rel (%p440) target = $region48
        $region47: #{tpu_custom_call.1} parent=43 // pred_region
          %s443 = sand.u32 %s97, 1
          %s444 = scalar_lea.sflag [#allocation4], %s443
          %s445 = sand.u32 %s97, 1
          %s446 = smul.addr %s445, 16
          %s447 = scalar_lea.vmem [#allocation5], %s446
          %448 = dma.done %s444, 256
        $region48: #{tpu_custom_call.1} parent=43 // pred_fallthru
          _
      $region44: #{tpu_custom_call.1} parent=5 // pred_fallthru
        _
    $region6: #{tpu_custom_call.1} parent=1 // loop_footer
      %s19 = sadd.s32 1, %s15
    $region7: #{tpu_custom_call.1} parent=1 // loop_footer_branch
      %14 = sbr.rel target = $region3
    $region8: #{tpu_custom_call.1} parent=1 // loop_exit
      _
    %449 = vsyncpa [#allocation3], 1
    %s450 = scalar_lea.sflag [#allocation3], 1
    %451 = vsyncpa %s450, 1
    %452 = vsyncpa [#allocation4], 1
    %s453 = scalar_lea.sflag [#allocation4], 1
    %454 = vsyncpa %s453, 1

</llo_original>
